<compile_context>
chip_gen: v6e
topology: v6e:2x2x1
jax: 0.10.0
libtpu: 0.0.40
codegen_flags: <defaults>
</compile_context>

<pallas_src>
import jax
import jax.numpy as jnp
from jax.experimental import pallas as pl
from jax.experimental.pallas import tpu as pltpu


def _round_up(x: int, m: int) -> int:
    return ((x + m - 1) // m) * m


# Conservative per-batch-column VMEM estimate (bytes):
#   x tile  (12,T) f32 padded to 16 sublanes, double-buffered : 128
#   out tile (4,T) f32 padded to  8 sublanes, double-buffered :  64
#   in-kernel temps (x bf16, h f32, h bf16, y f32)            : ~112
_VMEM_BYTES_PER_COL = 384


def _vmem_capacity_bytes() -> int:
    try:
        return int(pltpu.get_tpu_info().vmem_capacity_bytes)
    except Exception:
        return 64 << 20  # assume the smallest (v7x per-TensorCore VMEM)


def _pick_tile(batch: int, tile_b: int) -> int:
    if batch <= 128:
        # Single block equal to the full (tiny) batch dim -> always legal.
        return batch
    # Multiple of 128 lanes; cap so the grid has >= 2 steps (both v7x TCs busy).
    half = _round_up(pl.cdiv(batch, 2), 128)
    return max(128, min(tile_b, half))


def geo_encoder_kernel(x_ref, w1_ref, b1_ref, w2_ref, b2_ref, o_ref):
    # Lane-dense: batch on the lane axis; contraction dims sit on x's sublanes
    # and the weights' lanes, so no per-tile XLU transpose is required.
    x = x_ref[...].astype(jnp.bfloat16)                              # (12, T)
    h = jnp.dot(w1_ref[...].astype(jnp.bfloat16), x,
                preferred_element_type=jnp.float32)                  # (8, T) f32 acc
    h = jnp.maximum(h + b1_ref[...], 0.0)                            # bias + ReLU in f32
    y = jnp.dot(w2_ref[...].astype(jnp.bfloat16), h.astype(jnp.bfloat16),
                preferred_element_type=jnp.float32)                  # (4, T) f32 acc
    o_ref[...] = (y + b2_ref[...]).astype(o_ref.dtype)               # lane-dense store


def geo_encoder_t(x_t, w1, b1, w2, b2, *, tile_b=None):
    """Lane-dense entry point (no extra HBM passes).

    x_t: (input_dim, B) float32, batch on the last (lane) axis.
    w1: (hidden, input_dim), b1: (hidden, 1), w2: (out, hidden), b2: (out, 1).
    Returns (out, B) float32.
    """
    input_dim, batch = x_t.shape
    hidden = w1.shape[0]
    out_dim = w2.shape[0]

    vmem_cap = _vmem_capacity_bytes()
    if tile_b is None:
        # Spend about half of VMEM on the streamed batch pipeline.
        tile_b = ((vmem_cap // 2) // _VMEM_BYTES_PER_COL) // 128 * 128
        tile_b = int(max(128, min(tile_b, 262144)))

    tile = _pick_tile(batch, tile_b)
    grid = (pl.cdiv(batch, tile),)  # ragged last block handled by Pallas masking

    vmem_limit = int(min(vmem_cap, tile * _VMEM_BYTES_PER_COL + (16 << 20)))

    flops = 2 * batch * (input_dim * hidden + hidden * out_dim)
    bytes_accessed = 4 * (batch * (input_dim + out_dim)
                          + w1.size + b1.size + w2.size + b2.size)

    return pl.pallas_call(
        geo_encoder_kernel,
        out_shape=jax.ShapeDtypeStruct((out_dim, batch), jnp.float32),
        grid=grid,
        in_specs=[
            # x: streamed batch tiles (double-buffered by the Pallas pipeline).
            pl.BlockSpec((input_dim, tile), lambda i: (0, i)),
            # Weights / biases: constant index_map -> resident in VMEM across steps.
            pl.BlockSpec((hidden, input_dim), lambda i: (0, 0)),
            pl.BlockSpec((hidden, 1), lambda i: (0, 0)),
            pl.BlockSpec((out_dim, hidden), lambda i: (0, 0)),
            pl.BlockSpec((out_dim, 1), lambda i: (0, 0)),
        ],
        out_specs=pl.BlockSpec((out_dim, tile), lambda i: (0, i)),
        compiler_params=pltpu.CompilerParams(
            dimension_semantics=("parallel",),   # shard batch tiles across TCs (v7x)
            vmem_limit_bytes=vmem_limit,
        ),
        cost_estimate=pl.CostEstimate(
            flops=flops, transcendentals=0, bytes_accessed=bytes_accessed),
    )(x_t, w1, b1, w2, b2)


def geo_encoder(x, w1, b1, w2, b2, *, tile_b=None):
    """Torch-semantics convenience wrapper: x (B, input_dim) -> (B, encoded_dim).

    Weights use the torch nn.Linear layout: w1 (8, 12), b1 (8,), w2 (4, 8), b2 (4,).
    NOTE: the two transposes here re-stream x/out through HBM and exist only as
    interface glue for this standalone demo; in a real model plumb the (D, B)
    lane-dense layout into the producer/consumer and call geo_encoder_t directly.
    """
    out_t = geo_encoder_t(
        x.T, w1, b1.reshape(-1, 1), w2, b2.reshape(-1, 1), tile_b=tile_b)
    return out_t.T


def init_params(key, input_dim=12, hidden_dim=8, encoded_dim=4):
    """Deterministic init mirroring nn.Linear default (uniform +-1/sqrt(fan_in)).

    Stored in torch layout: weight (out_features, in_features), bias (out_features,).
    """
    k1, k2, k3, k4 = jax.random.split(key, 4)
    bound1 = 1.0 / jnp.sqrt(input_dim)
    bound2 = 1.0 / jnp.sqrt(hidden_dim)
    w1 = jax.random.uniform(k1, (hidden_dim, input_dim), jnp.float32, -bound1, bound1)
    b1 = jax.random.uniform(k2, (hidden_dim,), jnp.float32, -bound1, bound1)
    w2 = jax.random.uniform(k3, (encoded_dim, hidden_dim), jnp.float32, -bound2, bound2)
    b2 = jax.random.uniform(k4, (encoded_dim,), jnp.float32, -bound2, bound2)
    return w1, b1, w2, b2


def _reference_f32(x, w1, b1, w2, b2):
    return jnp.maximum(x @ w1.T + b1, 0.0) @ w2.T + b2


def _reference_bf16(x, w1, b1, w2, b2):
    # Mirrors the kernel's bf16-operand / f32-accumulate dots.
    h = jnp.dot(x.astype(jnp.bfloat16), w1.T.astype(jnp.bfloat16),
                preferred_element_type=jnp.float32)
    h = jnp.maximum(h + b1, 0.0)
    y = jnp.dot(h.astype(jnp.bfloat16), w2.T.astype(jnp.bfloat16),
                preferred_element_type=jnp.float32)
    return y + b2


if __name__ == "__main__":
    key = jax.random.PRNGKey(0)
    k_x, k_x2, k_p = jax.random.split(key, 3)

    input_dim, encoded_dim = 12, 4
    w1, b1, w2, b2 = init_params(k_p, input_dim=input_dim, encoded_dim=encoded_dim)

    # 1) Small batch (single partial block path) through the torch-layout wrapper.
    batch = 8
    x = jax.random.normal(k_x, (batch, input_dim), jnp.float32)
    out = jax.block_until_ready(geo_encoder(x, w1, b1, w2, b2))
    assert out.shape == (batch, encoded_dim)
    assert jnp.allclose(out, _reference_bf16(x, w1, b1, w2, b2), atol=1e-4, rtol=1e-4)
    assert jnp.allclose(out, _reference_f32(x, w1, b1, w2, b2), atol=5e-2, rtol=5e-2)

    # 2) Ragged batch exercising multi-step grid with a masked last block
    #    (tile_b=128 -> grid=3, last block has 44 valid columns), using the
    #    lane-dense (D, B)-native entry point (no wrapper transposes).
    batch2 = 300
    x2_t = jax.random.normal(k_x2, (input_dim, batch2), jnp.float32)
    out2_t = jax.block_until_ready(
        geo_encoder_t(x2_t, w1, b1.reshape(-1, 1), w2, b2.reshape(-1, 1), tile_b=128))
    assert out2_t.shape == (encoded_dim, batch2)
    x2 = x2_t.T
    assert jnp.allclose(out2_t.T, _reference_bf16(x2, w1, b1, w2, b2), atol=1e-4, rtol=1e-4)
    assert jnp.allclose(out2_t.T, _reference_f32(x2, w1, b1, w2, b2), atol=5e-2, rtol=5e-2)

    # 3) Default (auto-sized) tile path on a batch that is not tile-aligned.
    batch3 = 1000
    x3_t = jax.random.normal(k_x, (input_dim, batch3), jnp.float32)
    out3_t = jax.block_until_ready(
        geo_encoder_t(x3_t, w1, b1.reshape(-1, 1), w2, b2.reshape(-1, 1)))
    assert out3_t.shape == (encoded_dim, batch3)
    x3 = x3_t.T
    assert jnp.allclose(out3_t.T, _reference_bf16(x3, w1, b1, w2, b2), atol=1e-4, rtol=1e-4)

    print("KERNEL_OK")
</pallas_src>

<mosaic_0001>
module attributes {stable_mosaic.version = 11 : i64} {
  func.func @geo_encoder_kernel(%arg0: i32, %arg1: memref<12x8xf32, #tpu.memory_space<vmem>>, %arg2: memref<8x12xf32, #tpu.memory_space<vmem>>, %arg3: memref<8x1xf32, #tpu.memory_space<vmem>>, %arg4: memref<4x8xf32, #tpu.memory_space<vmem>>, %arg5: memref<4x1xf32, #tpu.memory_space<vmem>>, %arg6: memref<4x8xf32, #tpu.memory_space<vmem>>) attributes {dimension_semantics = [#tpu.dimension_semantics<parallel>], iteration_bounds = array<i64: 1>, scalar_prefetch = 0 : i64, scratch_operands = 0 : i64, tpu.core_type = #tpu.core_type<tc>, window_params = [{transform_indices = @transform_0, window_bounds = array<i64: 12, 8>}, {pipeline_mode = #tpu.pipeline_mode<synchronous>, transform_indices = @transform_1, window_bounds = array<i64: 8, 12>}, {pipeline_mode = #tpu.pipeline_mode<synchronous>, transform_indices = @transform_2, window_bounds = array<i64: 8, 1>}, {pipeline_mode = #tpu.pipeline_mode<synchronous>, transform_indices = @transform_3, window_bounds = array<i64: 4, 8>}, {pipeline_mode = #tpu.pipeline_mode<synchronous>, transform_indices = @transform_4, window_bounds = array<i64: 4, 1>}, {transform_indices = @transform_5, window_bounds = array<i64: 4, 8>}]} {
    %c0 = arith.constant 0 : index
    %c0_0 = arith.constant 0 : index
    %0 = vector.load %arg1[%c0, %c0_0] : memref<12x8xf32, #tpu.memory_space<vmem>>, vector<12x8xf32>
    %1 = arith.truncf %0 : vector<12x8xf32> to vector<12x8xbf16>
    %c0_1 = arith.constant 0 : index
    %c0_2 = arith.constant 0 : index
    %2 = vector.load %arg2[%c0_1, %c0_2] : memref<8x12xf32, #tpu.memory_space<vmem>>, vector<8x12xf32>
    %3 = arith.truncf %2 : vector<8x12xf32> to vector<8x12xbf16>
    %cst = arith.constant dense<0.000000e+00> : vector<8x8xf32>
    %4 = tpu.matmul %3, %1, %cst {dimension_numbers = #tpu.dot_dimension_numbers<[1], [0], [0], [1], [0, 0, 1, 1], [], []>} : vector<8x12xbf16>, vector<12x8xbf16>, vector<8x8xf32> -> vector<8x8xf32>
    %c0_3 = arith.constant 0 : index
    %c0_4 = arith.constant 0 : index
    %5 = vector.load %arg3[%c0_3, %c0_4] : memref<8x1xf32, #tpu.memory_space<vmem>>, vector<8x1xf32>
    %6 = vector.broadcast %5 : vector<8x1xf32> to vector<8x8xf32>
    %7 = arith.addf %4, %6 : vector<8x8xf32>
    %cst_5 = arith.constant 0.000000e+00 : f32
    %8 = vector.broadcast %cst_5 : f32 to vector<8x8xf32>
    %9 = arith.maximumf %7, %8 : vector<8x8xf32>
    %c0_6 = arith.constant 0 : index
    %c0_7 = arith.constant 0 : index
    %10 = vector.load %arg4[%c0_6, %c0_7] : memref<4x8xf32, #tpu.memory_space<vmem>>, vector<4x8xf32>
    %11 = arith.truncf %10 : vector<4x8xf32> to vector<4x8xbf16>
    %12 = arith.truncf %9 : vector<8x8xf32> to vector<8x8xbf16>
    %cst_8 = arith.constant dense<0.000000e+00> : vector<4x8xf32>
    %13 = tpu.matmul %11, %12, %cst_8 {dimension_numbers = #tpu.dot_dimension_numbers<[1], [0], [0], [1], [0, 0, 1, 1], [], []>} : vector<4x8xbf16>, vector<8x8xbf16>, vector<4x8xf32> -> vector<4x8xf32>
    %c0_9 = arith.constant 0 : index
    %c0_10 = arith.constant 0 : index
    %14 = vector.load %arg5[%c0_9, %c0_10] : memref<4x1xf32, #tpu.memory_space<vmem>>, vector<4x1xf32>
    %15 = vector.broadcast %14 : vector<4x1xf32> to vector<4x8xf32>
    %16 = arith.addf %13, %15 : vector<4x8xf32>
    %c0_11 = arith.constant 0 : index
    %c0_12 = arith.constant 0 : index
    %17 = vector.load %arg6[%c0_11, %c0_12] : memref<4x8xf32, #tpu.memory_space<vmem>>, vector<4x8xf32>
    tpu.vector_store %arg6[%c0_11, %c0_12], %16 {strides = array<i32>} : memref<4x8xf32, #tpu.memory_space<vmem>>, vector<4x8xf32>,
    return
  }
  func.func @transform_0(%arg0: i32) -> (i32, i32) {
    %c0_i32 = arith.constant 0 : i32
    %c0_i32_0 = arith.constant 0 : i32
    return %c0_i32, %arg0 : i32, i32
  }
  func.func @transform_1(%arg0: i32) -> (i32, i32) {
    %c0_i32 = arith.constant 0 : i32
    %c0_i32_0 = arith.constant 0 : i32
    %c0_i32_1 = arith.constant 0 : i32
    return %c0_i32, %c0_i32_0 : i32, i32
  }
  func.func @transform_2(%arg0: i32) -> (i32, i32) {
    %c0_i32 = arith.constant 0 : i32
    %c0_i32_0 = arith.constant 0 : i32
    %c0_i32_1 = arith.constant 0 : i32
    return %c0_i32, %c0_i32_0 : i32, i32
  }
  func.func @transform_3(%arg0: i32) -> (i32, i32) {
    %c0_i32 = arith.constant 0 : i32
    %c0_i32_0 = arith.constant 0 : i32
    %c0_i32_1 = arith.constant 0 : i32
    return %c0_i32, %c0_i32_0 : i32, i32
  }
  func.func @transform_4(%arg0: i32) -> (i32, i32) {
    %c0_i32 = arith.constant 0 : i32
    %c0_i32_0 = arith.constant 0 : i32
    %c0_i32_1 = arith.constant 0 : i32
    return %c0_i32, %c0_i32_0 : i32, i32
  }
  func.func @transform_5(%arg0: i32) -> (i32, i32) {
    %c0_i32 = arith.constant 0 : i32
    %c0_i32_0 = arith.constant 0 : i32
    return %c0_i32, %arg0 : i32, i32
  }
}

</mosaic_0001>

<llo_original>
// kernel: tpu_custom_call.1
$region0: #{tpu_custom_call.1}
  #allocation0 [shape = 'u32[]', space=smem, size = 0x4, offset = 0x4, fixed_abs, tag = 'smem constant byte address 0x4 - core index']
  #allocation1 [shape = 'u32[144,128]{1,0:T(1,128)}', space=vmem, size = 0x12000, scoped, tag = 'internal scratch']
  %s0 = inlined_call_operand.vmem [shape: f32[12,8], index: 0, kind: input, shape index: {}]
  %s1 = inlined_call_operand.vmem [shape: f32[8,12], index: 1, kind: input, shape index: {}]
  %s2 = inlined_call_operand.vmem [shape: f32[8,1], index: 2, kind: input, shape index: {}]
  %s3 = inlined_call_operand.vmem [shape: f32[4,8], index: 3, kind: input, shape index: {}]
  %s4 = inlined_call_operand.vmem [shape: f32[4,1], index: 4, kind: input, shape index: {}]
  %s5 = inlined_call_operand.hbm [shape: f32[4,8], index: 5, kind: output, shape index: {}]
  %s6 = sld [smem:[#allocation0]]
  $region30: #{tpu_custom_call.1} parent=0
    _
  %s8 = ssub.s32 1, %s6
  %s9 = scalar_select 0, %s8, %s6
  $region1: #{tpu_custom_call.1} parent=0
    #allocation2 [shape = 'u8[2048]{0}', space=vmem, size = 0x800, scoped, tag = 'output window, operand 0, single buffered']
    #allocation3 [shape = 's32[1]{0}', space=sflag, size = 0x4, scoped, tag = 'scoped memory for tpu_custom_call.1']
    %10 = vsyncpa [#allocation3], 0
    // Predicated region
    $region2: #{tpu_custom_call.1} parent=1 // pred_check
      _
    $region3: #{tpu_custom_call.1} parent=1 // pred_check_branch
      %12 = sbr.rel (0) target = $region5
    $region4: #{tpu_custom_call.1} parent=1 // pred_region
      _
    $region5: #{tpu_custom_call.1} parent=1 // pred_fallthru
      _
    // Predicated region
    $region6: #{tpu_custom_call.1} parent=1 // pred_check
      _
    $region7: #{tpu_custom_call.1} parent=1 // pred_check_branch
      %14 = sbr.rel (0) target = $region9
    $region8: #{tpu_custom_call.1} parent=1 // pred_region
      _
    $region9: #{tpu_custom_call.1} parent=1 // pred_fallthru
      _
    // Predicated region
    $region10: #{tpu_custom_call.1} parent=1 // pred_check
      _
    $region11: #{tpu_custom_call.1} parent=1 // pred_check_branch
      %16 = sbr.rel (0) target = $region13
    $region12: #{tpu_custom_call.1} parent=1 // pred_region
      _
    $region13: #{tpu_custom_call.1} parent=1 // pred_fallthru
      _
    // Predicated region
    $region14: #{tpu_custom_call.1} parent=1 // pred_check
      _
    $region15: #{tpu_custom_call.1} parent=1 // pred_check_branch
      %18 = sbr.rel (0) target = $region17
    $region16: #{tpu_custom_call.1} parent=1 // pred_region
      _
    $region17: #{tpu_custom_call.1} parent=1 // pred_fallthru
      _
    // Predicated region
    $region18: #{tpu_custom_call.1} parent=1 // pred_check
      _
    $region19: #{tpu_custom_call.1} parent=1 // pred_check_branch
      %20 = sbr.rel (0) target = $region21
    $region20: #{tpu_custom_call.1} parent=1 // pred_region
      _
    $region21: #{tpu_custom_call.1} parent=1 // pred_fallthru
      _
    %v22 = vld [vmem:[%s0] sm:$0xff]
    %v23 = vld [vmem:[%s0 + $0x8] sm:$0xf]
    %v24 = vpack.c.bf16 %v23, %v22
    %v25 = vld [vmem:[%s1] sm:$0xff]
    %v26 = vpack.c.bf16 %v25, %v25
    %v27 = vld [vmem:[%s2] sm:$0xff]
    %29 = vset.pattern.permute.xlu0 0
    %30 = vperm.xlu0 %29, %v27
    %v31 = vpop.permute.xlu0 %30
    %vm33 = vcmask 97280
    %v35 = vsel %vm33, %v26, 0
    %vm37 = vcmask 1045504
    %v39 = vsel %vm37, %v24, 0
    %41 = vmatprep.subr.bf16.mxu0 0
    %42 = vmatpush1.bf16.msra.mxu0 0
    %43 = vmatprep.subr.bf16.mxu0 0
    %44 = vmatpush1.bf16.msra.mxu0 0
    %45 = vmatprep.subr.bf16.mxu0 0
    %46 = vmatpush1.bf16.msra.mxu0 0
    %47 = vmatprep.subr.bf16.mxu0 0
    %48 = vmatpush1.bf16.msra.mxu0 0
    %49 = vmatprep.subr.bf16.mxu0 0
    %50 = vmatpush1.bf16.msra.mxu0 0
    %51 = vmatprep.subr.bf16.mxu0 0
    %52 = vmatpush1.bf16.msra.mxu0 0
    %53 = vmatprep.subr.bf16.mxu0 0
    %54 = vmatpush1.bf16.msra.mxu0 0
    %55 = vmatprep.subr.bf16.mxu0 0
    %56 = vmatpush1.bf16.msra.mxu0 %v39
    %57 = vmatprep.subr.bf16.mxu0 0
    %58 = vmatpush2.bf16.msra.mxu0 0
    %59 = vmatprep.subr.bf16.mxu0 0
    %60 = vmatpush2.bf16.msra.mxu0 0
    %61 = vmatprep.subr.bf16.mxu0 0
    %62 = vmatpush2.bf16.msra.mxu0 0
    %63 = vmatprep.subr.bf16.mxu0 0
    %64 = vmatpush2.bf16.msra.mxu0 0
    %65 = vmatprep.subr.bf16.mxu0 0
    %66 = vmatpush2.bf16.msra.mxu0 0
    %67 = vmatprep.subr.bf16.mxu0 0
    %68 = vmatpush2.bf16.msra.mxu0 0
    %69 = vmatprep.subr.bf16.mxu0 0
    %70 = vmatpush2.bf16.msra.mxu0 0
    %71 = vmatprep.subr.bf16.mxu0 0
    %72 = vmatpush2.bf16.msra.mxu0 0
    %73 = vmatprep.mubr.bf16.mxu0 0
    %74 = vmatmul.mubr.bf16.gmra.mxu0 %v35
    %v75 = vpop.f32.mrf.mxu0
    %v76 = vadd.f32 %v31, %v75
    %v77 = vpop.f32.mrf.mxu0
    %v78 = vpop.f32.mrf.mxu0
    %v79 = vpop.f32.mrf.mxu0
    %80 = vdwg.mxu0
    %v81 = vmax.f32 %v76, 0.0
    %v82 = vld [vmem:[%s3] sm:$0xf]
    %v83 = vpack.c.bf16 %v82, %v82
    %v84 = vpack.c.bf16 %v81, %v81
    %v85 = vld [vmem:[%s4] sm:$0xf]
    %87 = vset.pattern.permute.xlu0 0
    %88 = vperm.xlu0 %87, %v85
    %v89 = vpop.permute.xlu0 %88
    %vm91 = vcmask 64512
    %v93 = vsel %vm91, %v83, 0
    %vm95 = vcmask 1043456
    %v97 = vsel %vm95, %v84, 0
    %99 = vmatprep.subr.bf16.mxu0 0
    %100 = vmatpush1.bf16.msra.mxu0 0
    %101 = vmatprep.subr.bf16.mxu0 0
    %102 = vmatpush1.bf16.msra.mxu0 0
    %103 = vmatprep.subr.bf16.mxu0 0
    %104 = vmatpush1.bf16.msra.mxu0 0
    %105 = vmatprep.subr.bf16.mxu0 0
    %106 = vmatpush1.bf16.msra.mxu0 0
    %107 = vmatprep.subr.bf16.mxu0 0
    %108 = vmatpush1.bf16.msra.mxu0 0
    %109 = vmatprep.subr.bf16.mxu0 0
    %110 = vmatpush1.bf16.msra.mxu0 0
    %111 = vmatprep.subr.bf16.mxu0 0
    %112 = vmatpush1.bf16.msra.mxu0 0
    %113 = vmatprep.subr.bf16.mxu0 0
    %114 = vmatpush1.bf16.msra.mxu0 %v97
    %115 = vmatprep.subr.bf16.mxu0 0
    %116 = vmatpush2.bf16.msra.mxu0 0
    %117 = vmatprep.subr.bf16.mxu0 0
    %118 = vmatpush2.bf16.msra.mxu0 0
    %119 = vmatprep.subr.bf16.mxu0 0
    %120 = vmatpush2.bf16.msra.mxu0 0
    %121 = vmatprep.subr.bf16.mxu0 0
    %122 = vmatpush2.bf16.msra.mxu0 0
    %123 = vmatprep.subr.bf16.mxu0 0
    %124 = vmatpush2.bf16.msra.mxu0 0
    %125 = vmatprep.subr.bf16.mxu0 0
    %126 = vmatpush2.bf16.msra.mxu0 0
    %127 = vmatprep.subr.bf16.mxu0 0
    %128 = vmatpush2.bf16.msra.mxu0 0
    %129 = vmatprep.subr.bf16.mxu0 0
    %130 = vmatpush2.bf16.msra.mxu0 0
    %131 = vmatprep.mubr.bf16.mxu0 0
    %132 = vmatmul.mubr.bf16.gmra.mxu0 %v93
    %v133 = vpop.f32.mrf.mxu0
    %v134 = vadd.f32 %v89, %v133
    %v135 = vpop.f32.mrf.mxu0
    %v136 = vpop.f32.mrf.mxu0
    %v137 = vpop.f32.mrf.mxu0
    %138 = vdwg.mxu0
    %vm139 = vcmask 60416
    %140 = vst.msk [vmem:[#allocation2] sm:$0xf] %vm139, %v134
    // Predicated region
    $region22: #{tpu_custom_call.1} parent=1 // pred_check
      _
    $region23: #{tpu_custom_call.1} parent=1 // pred_check_branch
      %142 = sbr.rel (0) target = $region25
    $region24: #{tpu_custom_call.1} parent=1 // pred_region
      %s144 = ssub.s32 64, 64
      %145 = vsyncadd [#allocation3], %s144
      %s147 = sshll.u32 [#allocation2], 4
      %s148 = int_to_ptr.vmem [resolvable:$true] %s147
      %150 = dma.vmem_to_hbm [thread:$0]  %s148, 64, %s5, [#allocation3]
    $region25: #{tpu_custom_call.1} parent=1 // pred_fallthru
      _
    // Predicated region
    $region26: #{tpu_custom_call.1} parent=1 // pred_check
      _
    $region27: #{tpu_custom_call.1} parent=1 // pred_check_branch
      %152 = sbr.rel (0) target = $region29
    $region28: #{tpu_custom_call.1} parent=1 // pred_region
      %153 = dma.done [#allocation3], 64
    $region29: #{tpu_custom_call.1} parent=1 // pred_fallthru
      _
    %154 = vsyncpa [#allocation3], 1

</llo_original>
